<compile_context>
chip_gen: v6e
topology: v6e:2x2x1
jax: 0.10.0
libtpu: 0.0.40
codegen_flags: <defaults>
</compile_context>

<pallas_src>
import jax
import jax.numpy as jnp
from jax.experimental import pallas as pl
from jax.experimental.pallas import tpu as pltpu


# Below this per-row run length (in bytes) a strided HBM->HBM DMA is
# descriptor/row-setup bound rather than bandwidth bound; use the VMEM path.
_MIN_DMA_RUN_BYTES = 512


# -----------------------------------------------------------------------------
# Primary path: single whole-tensor strided DMA, no grid, no VMEM staging.
# -----------------------------------------------------------------------------
def _chomp_dma_kernel(x_hbm, o_hbm, sem):
    # x_hbm: (N, C, L) in HBM, o_hbm: (N, C, L_out) in HBM.
    l_out = o_hbm.shape[-1]
    # One rectangular descriptor: (N, C) fully taken and contiguous, so this is
    # rows = N*C, stride = L, run = L_out, copied HBM->HBM by the DMA engine.
    cp = pltpu.make_async_copy(x_hbm.at[:, :, :l_out], o_hbm, sem)
    cp.start()
    cp.wait()


def _chomp1d_dma(x: jax.Array, l_out: int) -> jax.Array:
    n, c, _ = x.shape
    itemsize = x.dtype.itemsize
    bytes_moved = 2 * n * c * l_out * itemsize  # read + write of the kept slab
    return pl.pallas_call(
        _chomp_dma_kernel,
        out_shape=jax.ShapeDtypeStruct((n, c, l_out), x.dtype),
        in_specs=[pl.BlockSpec(memory_space=pl.ANY)],
        out_specs=pl.BlockSpec(memory_space=pl.ANY),
        scratch_shapes=[pltpu.SemaphoreType.DMA(())],
        cost_estimate=pl.CostEstimate(
            flops=0, transcendentals=0, bytes_accessed=bytes_moved
        ),
    )(x)


# -----------------------------------------------------------------------------
# Fallback path (short rows only): VMEM-staged, rows = N*C folded.
# -----------------------------------------------------------------------------
def _chomp_rows_kernel(x_ref, o_ref):
    # x_ref: (TR, L) VMEM tile, o_ref: (TR, L_out) VMEM tile.
    # Bare ref-to-ref slice assignment: single load/store stream.
    o_ref[...] = x_ref[:, : o_ref.shape[-1]]


def _chomp1d_vmem(x: jax.Array, l_out: int) -> jax.Array:
    n, c, l = x.shape
    r = n * c
    x2 = x.reshape(r, l)  # free: (N, C, L) is contiguous as (N*C, L)

    itemsize = x.dtype.itemsize
    # Dtype-aware sublane rounding: 8 rows for 4-byte, 16 for 2-byte,
    # 32 for 1-byte dtypes (packed dtypes pack along sublanes).
    sub = max(8, 32 // max(itemsize, 1))

    if r <= sub:
        tr = r  # full array dim -> always a legal block shape
    else:
        # Target ~10 MiB per (in + out) buffer set -> ~20 MiB double-buffered:
        # comfortably under v7x's 64 MiB physical VMEM, and we raise
        # vmem_limit_bytes so v5e's 16 MiB default scoped limit is not binding.
        bytes_per_row = (l + l_out) * itemsize
        rows_budget = (10 * 1024 * 1024) // max(bytes_per_row, 1)
        tr = max(sub, (min(rows_budget, 4096) // sub) * sub)
        tr = min(tr, ((r + sub - 1) // sub) * sub)  # no need to exceed r

    bytes_moved = r * (l + l_out) * itemsize
    out2 = pl.pallas_call(
        _chomp_rows_kernel,
        out_shape=jax.ShapeDtypeStruct((r, l_out), x.dtype),
        grid=(pl.cdiv(r, tr),),
        in_specs=[pl.BlockSpec((tr, l), lambda i: (i, 0))],
        out_specs=pl.BlockSpec((tr, l_out), lambda i: (i, 0)),
        compiler_params=pltpu.CompilerParams(
            dimension_semantics=("arbitrary",),
            vmem_limit_bytes=40 * 1024 * 1024,
        ),
        cost_estimate=pl.CostEstimate(
            flops=0, transcendentals=0, bytes_accessed=bytes_moved
        ),
    )(x2)
    return out2.reshape(n, c, l_out)


# -----------------------------------------------------------------------------
# Public wrapper (same semantics as torch Chomp1d.forward).
# -----------------------------------------------------------------------------
def chomp1d(x: jax.Array, chomp_size: int) -> jax.Array:
    """Pallas equivalent of torch Chomp1d: x[:, :, :-chomp_size]."""
    assert x.ndim == 3, "expected (N, C, L) input"
    _, _, l = x.shape
    assert 0 < chomp_size < l
    l_out = l - chomp_size
    # Static dispatch: whole-tensor strided HBM->HBM DMA unless the per-row
    # run is so short that strided-DMA efficiency collapses.
    if l_out * x.dtype.itemsize >= _MIN_DMA_RUN_BYTES:
        return _chomp1d_dma(x, l_out)
    return _chomp1d_vmem(x, l_out)
    # TODO(synk): inside a full TCN block, prefer a plain x[:, :, :l_out] slice
    # so XLA fuses the chomp into the adjacent causal conv (no standalone copy).


if __name__ == "__main__":
    key = jax.random.PRNGKey(0)
    k1, k2 = jax.random.split(key)

    # Case 1: short rows (L_out * 4 B < 512 B) -> VMEM-staged fallback path.
    N, C, L, chomp = 2, 4, 16, 2
    x_small = jax.random.normal(k1, (N, C, L), dtype=jnp.float32)
    out_small = jax.block_until_ready(chomp1d(x_small, chomp))
    ref_small = x_small[:, :, :-chomp]
    assert out_small.shape == (N, C, L - chomp), out_small.shape
    assert out_small.dtype == x_small.dtype
    assert jnp.array_equal(out_small, ref_small), "VMEM path mismatch"

    # Case 2: longer rows -> single whole-tensor strided HBM->HBM DMA path.
    N2, C2, L2, chomp2 = 2, 8, 256, 4
    x_big = jax.random.normal(k2, (N2, C2, L2), dtype=jnp.float32)
    out_big = jax.block_until_ready(chomp1d(x_big, chomp2))
    ref_big = x_big[:, :, :-chomp2]
    assert out_big.shape == (N2, C2, L2 - chomp2), out_big.shape
    assert out_big.dtype == x_big.dtype
    assert jnp.array_equal(out_big, ref_big), "DMA path mismatch"

    print("KERNEL_OK")
</pallas_src>

<mosaic_0001>
module attributes {stable_mosaic.version = 11 : i64} {
  func.func @_chomp_rows_kernel(%arg0: i32, %arg1: memref<8x16xf32, #tpu.memory_space<vmem>>, %arg2: memref<8x14xf32, #tpu.memory_space<vmem>>) attributes {dimension_semantics = [#tpu.dimension_semantics<arbitrary>], iteration_bounds = array<i64: 1>, scalar_prefetch = 0 : i64, scratch_operands = 0 : i64, tpu.core_type = #tpu.core_type<tc>, window_params = [{transform_indices = @transform_0, window_bounds = array<i64: 8, 16>}, {transform_indices = @transform_1, window_bounds = array<i64: 8, 14>}]} {
    %c0 = arith.constant 0 : index
    %c0_0 = arith.constant 0 : index
    %0 = vector.load %arg1[%c0, %c0_0] : memref<8x16xf32, #tpu.memory_space<vmem>>, vector<8x14xf32>
    %c0_1 = arith.constant 0 : index
    %c0_2 = arith.constant 0 : index
    %1 = vector.load %arg2[%c0_1, %c0_2] : memref<8x14xf32, #tpu.memory_space<vmem>>, vector<8x14xf32>
    tpu.vector_store %arg2[%c0_1, %c0_2], %0 {strides = array<i32>} : memref<8x14xf32, #tpu.memory_space<vmem>>, vector<8x14xf32>,
    return
  }
  func.func @transform_0(%arg0: i32) -> (i32, i32) {
    %c0_i32 = arith.constant 0 : i32
    %c0_i32_0 = arith.constant 0 : i32
    return %arg0, %c0_i32 : i32, i32
  }
  func.func @transform_1(%arg0: i32) -> (i32, i32) {
    %c0_i32 = arith.constant 0 : i32
    %c0_i32_0 = arith.constant 0 : i32
    return %arg0, %c0_i32 : i32, i32
  }
}

</mosaic_0001>

<llo_original>
// kernel: tpu_custom_call.1
$region0: #{tpu_custom_call.1}
  #allocation0 [shape = 'u32[]', space=smem, size = 0x4, offset = 0x4, fixed_abs, tag = 'smem constant byte address 0x4 - core index']
  #allocation1 [shape = 'u32[144,128]{1,0:T(1,128)}', space=vmem, size = 0x12000, scoped, tag = 'internal scratch']
  %s0 = inlined_call_operand.hbm [shape: f32[8,16], index: 0, kind: input, shape index: {}]
  %s1 = inlined_call_operand.hbm [shape: f32[8,14], index: 1, kind: output, shape index: {}]
  %s2 = sld [smem:[#allocation0]]
  $region18: #{tpu_custom_call.1} parent=0
    _
  %s4 = ssub.s32 1, %s2
  %s5 = scalar_select 0, %s4, %s2
  $region1: #{tpu_custom_call.1} parent=0
    #allocation2 [shape = 'u8[4096]{0}', space=vmem, size = 0x1000, scoped, tag = 'input window, operand 0, single buffered']
    #allocation3 [shape = 's32[1]{0}', space=sflag, size = 0x4, scoped, tag = 'scoped memory for tpu_custom_call.1']
    #allocation4 [shape = 's32[1]{0}', space=sflag, size = 0x4, scoped, tag = 'scoped memory for tpu_custom_call.1']
    #allocation5 [shape = 'u8[4096]{0}', space=vmem, size = 0x1000, scoped, tag = 'output window, operand 0, single buffered']
    %6 = vsyncpa [#allocation3], 0
    %7 = vsyncpa [#allocation4], 0
    // Predicated region
    $region2: #{tpu_custom_call.1} parent=1 // pred_check
      _
    $region3: #{tpu_custom_call.1} parent=1 // pred_check_branch
      %9 = sbr.rel (0) target = $region5
    $region4: #{tpu_custom_call.1} parent=1 // pred_region
      %s11 = ssub.s32 128, 128
      %12 = vsyncadd [#allocation3], %s11
      %s14 = sshll.u32 [#allocation2], 4
      %s15 = int_to_ptr.vmem [resolvable:$true] %s14
      %17 = dma.hbm_to_vmem [thread:$0]  %s0, 128, %s15, [#allocation3]
    $region5: #{tpu_custom_call.1} parent=1 // pred_fallthru
      _
    // Predicated region
    $region6: #{tpu_custom_call.1} parent=1 // pred_check
      _
    $region7: #{tpu_custom_call.1} parent=1 // pred_check_branch
      %19 = sbr.rel (0) target = $region9
    $region8: #{tpu_custom_call.1} parent=1 // pred_region
      %20 = dma.done [#allocation3], 128
    $region9: #{tpu_custom_call.1} parent=1 // pred_fallthru
      _
    %v21 = vld [vmem:[#allocation2] sm:$0xff]
    %vm22 = vcmask 113664
    %23 = vst.msk [vmem:[#allocation5] sm:$0xff] %vm22, %v21
    // Predicated region
    $region10: #{tpu_custom_call.1} parent=1 // pred_check
      _
    $region11: #{tpu_custom_call.1} parent=1 // pred_check_branch
      %25 = sbr.rel (0) target = $region13
    $region12: #{tpu_custom_call.1} parent=1 // pred_region
      %s27 = ssub.s32 128, 128
      %28 = vsyncadd [#allocation4], %s27
      %s30 = sshll.u32 [#allocation5], 4
      %s31 = int_to_ptr.vmem [resolvable:$true] %s30
      %33 = dma.vmem_to_hbm [thread:$0]  %s31, 128, %s1, [#allocation4]
    $region13: #{tpu_custom_call.1} parent=1 // pred_fallthru
      _
    // Predicated region
    $region14: #{tpu_custom_call.1} parent=1 // pred_check
      _
    $region15: #{tpu_custom_call.1} parent=1 // pred_check_branch
      %35 = sbr.rel (0) target = $region17
    $region16: #{tpu_custom_call.1} parent=1 // pred_region
      %36 = dma.done [#allocation4], 128
    $region17: #{tpu_custom_call.1} parent=1 // pred_fallthru
      _
    %37 = vsyncpa [#allocation3], 1
    %38 = vsyncpa [#allocation4], 1

</llo_original>
